<compile_context>
chip_gen: v7x
topology: tpu7x:2x2x1
jax: 0.10.0
libtpu: 0.0.40
codegen_flags: <defaults>
</compile_context>

<pallas_src>
import jax
import jax.numpy as jnp
from jax.experimental import pallas as pl
from jax.experimental.pallas import tpu as pltpu


# ----------------------------------------------------------------------------
# Kernel bodies
# ----------------------------------------------------------------------------

def _outconv_vpu_kernel(x_ref, w_ref, b_ref, o_ref):
    """Small-channel path: unrolled broadcast-FMA on the VPU.

    x_ref: (Nb, Cin, T) VMEM      w_ref: (Cout*Cin,) f32 SMEM
    b_ref: (Cout,)       f32 SMEM o_ref: (Nb, Cout, T) VMEM
    """
    nb, cin, _ = x_ref.shape
    cout = o_ref.shape[1]
    for n in range(nb):                         # static unroll over blocked batch
        x = x_ref[n].astype(jnp.float32)        # (Cin, T)
        rows = []
        for o in range(cout):
            acc = x[0] * w_ref[o * cin]
            for c in range(1, cin):
                acc = acc + x[c] * w_ref[o * cin + c]
            rows.append(acc + b_ref[o])
        o_ref[n] = jnp.stack(rows, axis=0).astype(o_ref.dtype)


def _outconv_mxu_kernel(x_ref, w_ref, b_ref, o_ref):
    """General path: W(Cout,Cin) @ x(Cin,T) per blocked batch image (MXU).

    x_ref: (Nb, Cin, T)  w_ref: (Cout, Cin)  b_ref: (Cout, 1) f32
    o_ref: (Nb, Cout, T)
    """
    nb = x_ref.shape[0]
    w = w_ref[...]
    b = b_ref[...]
    for n in range(nb):
        acc = jnp.dot(w, x_ref[n], preferred_element_type=jnp.float32)
        o_ref[n] = (acc + b).astype(o_ref.dtype)


# ----------------------------------------------------------------------------
# Tiling / budget helpers
# ----------------------------------------------------------------------------

def _sublane_pad(n, itemsize):
    # Sublane tile: 8 rows for f32, 16 for bf16, 32 for int8.
    sub = 8 * max(1, 4 // max(1, itemsize))
    return max(sub, -(-n // sub) * sub)


def _vmem_budget():
    """(working-set budget, scoped-vmem limit) in bytes, per TPU generation."""
    try:
        phys = int(pltpu.get_tpu_info().vmem_capacity_bytes)
    except Exception:
        phys = 64 * 1024 * 1024              # conservative: v7x per-core VMEM
    # ~65% for the double-buffered working set, ~75% as the scoped limit
    # (v7x: ~42 / 48 MiB of 64;  v5e/v6e: ~83 / 96 MiB of 128).
    return (phys * 13) // 20, (phys * 3) // 4


def _choose_tiling(N, Cin, Cout, HW, itemsize, budget,
                   target_step_bytes=4 << 20, max_batch_block=8):
    hw_full = pl.cdiv(HW, 128) * 128
    # HBM traffic per output column per batch image (input read + output write).
    traffic_col = (Cin + Cout) * itemsize
    # VMEM footprint per column per batch image: double-buffered in/out tiles
    # (sublane-padded) plus the f32 intermediates used inside the kernel body.
    vmem_col = (2 * (_sublane_pad(Cin, itemsize) + _sublane_pad(Cout, itemsize))
                * itemsize
                + (_sublane_pad(Cin, 4) + _sublane_pad(Cout, 4)) * 4)
    vmem_cols = max(128, (budget // vmem_col) // 128 * 128)

    if N == 1 or hw_full * traffic_col >= target_step_bytes:
        # The spatial axis alone can supply a large enough step.
        nb = 1
        tile_hw = min(hw_full, vmem_cols,
                      max(128, (target_step_bytes // traffic_col) // 128 * 128))
    else:
        # Spatial extent too small to amortize the per-step overhead: block
        # several batch images into one grid step (full spatial extent each).
        nb = target_step_bytes // max(1, hw_full * traffic_col)
        nb = max(1, min(nb, N, max_batch_block,
                        budget // max(1, hw_full * vmem_col)))
        tile_hw = min(hw_full, vmem_cols)

    # Guarantee >=2 grid blocks when possible so both v7x TensorCores get work
    # ('parallel' axes split across cores); costs at most one extra ~0.35 us
    # step on single-core v5e/v6e.
    if pl.cdiv(N, nb) * pl.cdiv(HW, tile_hw) < 2:
        if N >= 2:
            nb = -(-N // 2)
        elif hw_full >= 256:
            tile_hw = pl.cdiv(pl.cdiv(HW, 2), 128) * 128
    return nb, tile_hw


# ----------------------------------------------------------------------------
# Public wrapper
# ----------------------------------------------------------------------------

def out_conv(x_nchw, weight, bias, *, tile_hw=None, batch_block=None):
    """1x1 Conv2d forward, matching nn.Conv2d(in_channels, out_channels, 1).

    x_nchw: (N, Cin, H, W);  weight: (Cout, Cin, 1, 1);  bias: (Cout,)
    returns (N, Cout, H, W) in x's dtype.
    """
    N, Cin, H, W = x_nchw.shape
    Cout = weight.shape[0]
    HW = H * W
    itemsize = jnp.dtype(x_nchw.dtype).itemsize

    budget, vmem_limit = _vmem_budget()
    nb_auto, thw_auto = _choose_tiling(N, Cin, Cout, HW, itemsize, budget)
    nb = int(batch_block) if batch_block is not None else nb_auto
    thw = int(tile_hw) if tile_hw is not None else thw_auto
    thw = max(128, (thw // 128) * 128)
    thw = min(thw, pl.cdiv(HW, 128) * 128)
    nb = max(1, min(nb, N))

    # Free views of contiguous NCHW data -- no HBM traffic.
    x3d = x_nchw.reshape(N, Cin, HW)
    w2d = weight.reshape(Cout, Cin)

    grid = (pl.cdiv(N, nb), pl.cdiv(HW, thw))

    # Deepen pipelining on the streamed operands only when steps are forced to
    # stay tiny AND there are enough steps for the extra buffer to matter.
    step_bytes = nb * (Cin + Cout) * thw * itemsize
    deep = step_bytes < (256 << 10) and grid[0] * grid[1] >= 4
    pipe = dict(pipeline_mode=pl.Buffered(3)) if deep else {}

    x_spec = pl.BlockSpec((nb, Cin, thw), lambda i, j: (i, 0, j), **pipe)
    o_spec = pl.BlockSpec((nb, Cout, thw), lambda i, j: (i, 0, j), **pipe)

    if Cin <= 8 and Cout <= 8:
        # VPU fast path: weight/bias as f32 scalars in SMEM (keeps the MXU
        # idle instead of running a heavily padded (Cout,Cin)x(Cin,T) matmul).
        kernel = _outconv_vpu_kernel
        in_specs = [
            x_spec,
            pl.BlockSpec(memory_space=pltpu.MemorySpace.SMEM),
            pl.BlockSpec(memory_space=pltpu.MemorySpace.SMEM),
        ]
        w_arg = w2d.reshape(Cout * Cin).astype(jnp.float32)
        b_arg = bias.reshape(Cout).astype(jnp.float32)
    else:
        # MXU path: resident weight tile in VMEM (x's dtype), f32 bias.
        # TODO(synk): for very large Cin/Cout add a Cin grid axis ('arbitrary')
        # with an f32 VMEM accumulator and tile Cout to the MXU width
        # (128 on v5e, 256 on v6e/v7x).
        kernel = _outconv_mxu_kernel
        in_specs = [
            x_spec,
            pl.BlockSpec((Cout, Cin), lambda i, j: (0, 0)),
            pl.BlockSpec((Cout, 1), lambda i, j: (0, 0)),
        ]
        w_arg = w2d.astype(x_nchw.dtype)  # mixed-precision choice for bf16 x
        b_arg = bias.reshape(Cout, 1).astype(jnp.float32)

    out3d = pl.pallas_call(
        kernel,
        out_shape=jax.ShapeDtypeStruct((N, Cout, HW), x_nchw.dtype),
        grid=grid,
        in_specs=in_specs,
        out_specs=o_spec,
        compiler_params=pltpu.CompilerParams(
            dimension_semantics=("parallel", "parallel"),
            vmem_limit_bytes=int(vmem_limit),
        ),
    )(x3d, w_arg, b_arg)

    # Free reshape back to NCHW.
    return out3d.reshape(N, Cout, H, W)


def init_outconv_params(key, in_channels, out_channels, dtype=jnp.float32):
    """Deterministic init matching nn.Conv2d default (kaiming-uniform-ish)."""
    kw, kb = jax.random.split(key)
    bound = 1.0 / (float(in_channels) ** 0.5)  # kernel_size = 1
    weight = jax.random.uniform(
        kw, (out_channels, in_channels, 1, 1), dtype, -bound, bound)
    bias = jax.random.uniform(kb, (out_channels,), dtype, -bound, bound)
    return weight, bias


if __name__ == "__main__":
    key = jax.random.PRNGKey(0)
    k_x, k_p, k_x2, k_p2 = jax.random.split(key, 4)

    # --- Test 1: module-sized shapes (small channels -> VPU/SMEM fast path) ---
    N, Cin, H, W = 2, 4, 16, 16
    Cout = 3
    x = jax.random.normal(k_x, (N, Cin, H, W), jnp.float32)
    weight, bias = init_outconv_params(k_p, Cin, Cout)

    out = jax.block_until_ready(out_conv(x, weight, bias))
    ref = (jnp.einsum("nchw,oc->nohw", x, weight.reshape(Cout, Cin))
           + bias[None, :, None, None])
    assert out.shape == (N, Cout, H, W)
    err = float(jnp.max(jnp.abs(out - ref)))
    assert jnp.allclose(out, ref, atol=1e-4, rtol=1e-4), err

    # --- Test 2: larger channel counts (MXU path, N=1 spatial split) ---
    N2, Cin2, Cout2, H2, W2 = 1, 16, 16, 16, 16
    x2 = jax.random.normal(k_x2, (N2, Cin2, H2, W2), jnp.float32)
    weight2, bias2 = init_outconv_params(k_p2, Cin2, Cout2)

    out2 = jax.block_until_ready(out_conv(x2, weight2, bias2))
    ref2 = (jnp.einsum("nchw,oc->nohw", x2, weight2.reshape(Cout2, Cin2))
            + bias2[None, :, None, None])
    assert out2.shape == (N2, Cout2, H2, W2)
    err2 = float(jnp.max(jnp.abs(out2 - ref2)))
    assert jnp.allclose(out2, ref2, atol=1e-4, rtol=1e-4), err2

    print("KERNEL_OK")
</pallas_src>

<mosaic_0001>
module attributes {stable_mosaic.version = 11 : i64} {
  func.func @_outconv_vpu_kernel(%arg0: i32, %arg1: i32, %arg2: memref<1x4x256xf32, #tpu.memory_space<vmem>>, %arg3: memref<12xf32, #tpu.memory_space<smem>>, %arg4: memref<3xf32, #tpu.memory_space<smem>>, %arg5: memref<1x3x256xf32, #tpu.memory_space<vmem>>) attributes {dimension_semantics = [#tpu.dimension_semantics<parallel>, #tpu.dimension_semantics<parallel>], iteration_bounds = array<i64: 2, 1>, scalar_prefetch = 0 : i64, scratch_operands = 0 : i64, tpu.core_type = #tpu.core_type<tc>, window_params = [{transform_indices = @transform_0, window_bounds = array<i64: 1, 4, 256>}, {transform_indices = @transform_1, window_bounds = array<i64: 12>}, {transform_indices = @transform_2, window_bounds = array<i64: 3>}, {transform_indices = @transform_3, window_bounds = array<i64: 1, 3, 256>}]} {
    %c0 = arith.constant 0 : index
    %c0_0 = arith.constant 0 : index
    %c0_1 = arith.constant 0 : index
    %0 = vector.load %arg2[%c0, %c0_0, %c0_1] : memref<1x4x256xf32, #tpu.memory_space<vmem>>, vector<1x4x256xf32>
    %1 = vector.shape_cast %0 : vector<1x4x256xf32> to vector<4x256xf32>
    %2 = vector.extract_strided_slice %1 {offsets = [0, 0], sizes = [1, 256], strides = [1, 1]} : vector<4x256xf32> to vector<1x256xf32>
    %3 = vector.shape_cast %2 : vector<1x256xf32> to vector<256xf32>
    %c0_2 = arith.constant 0 : index
    %4 = memref.load %arg3[%c0_2] : memref<12xf32, #tpu.memory_space<smem>>
    %5 = vector.broadcast %4 : f32 to vector<256xf32>
    %6 = arith.mulf %3, %5 : vector<256xf32>
    %7 = vector.extract_strided_slice %1 {offsets = [1, 0], sizes = [1, 256], strides = [1, 1]} : vector<4x256xf32> to vector<1x256xf32>
    %8 = vector.shape_cast %7 : vector<1x256xf32> to vector<256xf32>
    %c1 = arith.constant 1 : index
    %9 = memref.load %arg3[%c1] : memref<12xf32, #tpu.memory_space<smem>>
    %10 = vector.broadcast %9 : f32 to vector<256xf32>
    %11 = arith.mulf %8, %10 : vector<256xf32>
    %12 = arith.addf %6, %11 : vector<256xf32>
    %13 = vector.extract_strided_slice %1 {offsets = [2, 0], sizes = [1, 256], strides = [1, 1]} : vector<4x256xf32> to vector<1x256xf32>
    %14 = vector.shape_cast %13 : vector<1x256xf32> to vector<256xf32>
    %c2 = arith.constant 2 : index
    %15 = memref.load %arg3[%c2] : memref<12xf32, #tpu.memory_space<smem>>
    %16 = vector.broadcast %15 : f32 to vector<256xf32>
    %17 = arith.mulf %14, %16 : vector<256xf32>
    %18 = arith.addf %12, %17 : vector<256xf32>
    %19 = vector.extract_strided_slice %1 {offsets = [3, 0], sizes = [1, 256], strides = [1, 1]} : vector<4x256xf32> to vector<1x256xf32>
    %20 = vector.shape_cast %19 : vector<1x256xf32> to vector<256xf32>
    %c3 = arith.constant 3 : index
    %21 = memref.load %arg3[%c3] : memref<12xf32, #tpu.memory_space<smem>>
    %22 = vector.broadcast %21 : f32 to vector<256xf32>
    %23 = arith.mulf %20, %22 : vector<256xf32>
    %24 = arith.addf %18, %23 : vector<256xf32>
    %c0_3 = arith.constant 0 : index
    %25 = memref.load %arg4[%c0_3] : memref<3xf32, #tpu.memory_space<smem>>
    %26 = vector.broadcast %25 : f32 to vector<256xf32>
    %27 = arith.addf %24, %26 : vector<256xf32>
    %28 = vector.extract_strided_slice %1 {offsets = [0, 0], sizes = [1, 256], strides = [1, 1]} : vector<4x256xf32> to vector<1x256xf32>
    %29 = vector.shape_cast %28 : vector<1x256xf32> to vector<256xf32>
    %c4 = arith.constant 4 : index
    %30 = memref.load %arg3[%c4] : memref<12xf32, #tpu.memory_space<smem>>
    %31 = vector.broadcast %30 : f32 to vector<256xf32>
    %32 = arith.mulf %29, %31 : vector<256xf32>
    %33 = vector.extract_strided_slice %1 {offsets = [1, 0], sizes = [1, 256], strides = [1, 1]} : vector<4x256xf32> to vector<1x256xf32>
    %34 = vector.shape_cast %33 : vector<1x256xf32> to vector<256xf32>
    %c5 = arith.constant 5 : index
    %35 = memref.load %arg3[%c5] : memref<12xf32, #tpu.memory_space<smem>>
    %36 = vector.broadcast %35 : f32 to vector<256xf32>
    %37 = arith.mulf %34, %36 : vector<256xf32>
    %38 = arith.addf %32, %37 : vector<256xf32>
    %39 = vector.extract_strided_slice %1 {offsets = [2, 0], sizes = [1, 256], strides = [1, 1]} : vector<4x256xf32> to vector<1x256xf32>
    %40 = vector.shape_cast %39 : vector<1x256xf32> to vector<256xf32>
    %c6 = arith.constant 6 : index
    %41 = memref.load %arg3[%c6] : memref<12xf32, #tpu.memory_space<smem>>
    %42 = vector.broadcast %41 : f32 to vector<256xf32>
    %43 = arith.mulf %40, %42 : vector<256xf32>
    %44 = arith.addf %38, %43 : vector<256xf32>
    %45 = vector.extract_strided_slice %1 {offsets = [3, 0], sizes = [1, 256], strides = [1, 1]} : vector<4x256xf32> to vector<1x256xf32>
    %46 = vector.shape_cast %45 : vector<1x256xf32> to vector<256xf32>
    %c7 = arith.constant 7 : index
    %47 = memref.load %arg3[%c7] : memref<12xf32, #tpu.memory_space<smem>>
    %48 = vector.broadcast %47 : f32 to vector<256xf32>
    %49 = arith.mulf %46, %48 : vector<256xf32>
    %50 = arith.addf %44, %49 : vector<256xf32>
    %c1_4 = arith.constant 1 : index
    %51 = memref.load %arg4[%c1_4] : memref<3xf32, #tpu.memory_space<smem>>
    %52 = vector.broadcast %51 : f32 to vector<256xf32>
    %53 = arith.addf %50, %52 : vector<256xf32>
    %54 = vector.extract_strided_slice %1 {offsets = [0, 0], sizes = [1, 256], strides = [1, 1]} : vector<4x256xf32> to vector<1x256xf32>
    %55 = vector.shape_cast %54 : vector<1x256xf32> to vector<256xf32>
    %c8 = arith.constant 8 : index
    %56 = memref.load %arg3[%c8] : memref<12xf32, #tpu.memory_space<smem>>
    %57 = vector.broadcast %56 : f32 to vector<256xf32>
    %58 = arith.mulf %55, %57 : vector<256xf32>
    %59 = vector.extract_strided_slice %1 {offsets = [1, 0], sizes = [1, 256], strides = [1, 1]} : vector<4x256xf32> to vector<1x256xf32>
    %60 = vector.shape_cast %59 : vector<1x256xf32> to vector<256xf32>
    %c9 = arith.constant 9 : index
    %61 = memref.load %arg3[%c9] : memref<12xf32, #tpu.memory_space<smem>>
    %62 = vector.broadcast %61 : f32 to vector<256xf32>
    %63 = arith.mulf %60, %62 : vector<256xf32>
    %64 = arith.addf %58, %63 : vector<256xf32>
    %65 = vector.extract_strided_slice %1 {offsets = [2, 0], sizes = [1, 256], strides = [1, 1]} : vector<4x256xf32> to vector<1x256xf32>
    %66 = vector.shape_cast %65 : vector<1x256xf32> to vector<256xf32>
    %c10 = arith.constant 10 : index
    %67 = memref.load %arg3[%c10] : memref<12xf32, #tpu.memory_space<smem>>
    %68 = vector.broadcast %67 : f32 to vector<256xf32>
    %69 = arith.mulf %66, %68 : vector<256xf32>
    %70 = arith.addf %64, %69 : vector<256xf32>
    %71 = vector.extract_strided_slice %1 {offsets = [3, 0], sizes = [1, 256], strides = [1, 1]} : vector<4x256xf32> to vector<1x256xf32>
    %72 = vector.shape_cast %71 : vector<1x256xf32> to vector<256xf32>
    %c11 = arith.constant 11 : index
    %73 = memref.load %arg3[%c11] : memref<12xf32, #tpu.memory_space<smem>>
    %74 = vector.broadcast %73 : f32 to vector<256xf32>
    %75 = arith.mulf %72, %74 : vector<256xf32>
    %76 = arith.addf %70, %75 : vector<256xf32>
    %c2_5 = arith.constant 2 : index
    %77 = memref.load %arg4[%c2_5] : memref<3xf32, #tpu.memory_space<smem>>
    %78 = vector.broadcast %77 : f32 to vector<256xf32>
    %79 = arith.addf %76, %78 : vector<256xf32>
    %80 = vector.shape_cast %27 : vector<256xf32> to vector<1x256xf32>
    %81 = vector.shape_cast %53 : vector<256xf32> to vector<1x256xf32>
    %82 = vector.shape_cast %79 : vector<256xf32> to vector<1x256xf32>
    %83 = tpu.concatenate %80, %81, %82 in 0 : vector<1x256xf32>, vector<1x256xf32>, vector<1x256xf32> -> vector<3x256xf32>
    %c0_6 = arith.constant 0 : index
    %c0_7 = arith.constant 0 : index
    %c0_8 = arith.constant 0 : index
    %84 = vector.load %arg5[%c0_6, %c0_7, %c0_8] : memref<1x3x256xf32, #tpu.memory_space<vmem>>, vector<1x3x256xf32>
    %85 = vector.shape_cast %84 : vector<1x3x256xf32> to vector<3x256xf32>
    %86 = vector.shape_cast %83 : vector<3x256xf32> to vector<1x3x256xf32>
    tpu.vector_store %arg5[%c0_6, %c0_7, %c0_8], %86 {strides = array<i32>} : memref<1x3x256xf32, #tpu.memory_space<vmem>>, vector<1x3x256xf32>,
    return
  }
  func.func @transform_0(%arg0: i32, %arg1: i32) -> (i32, i32, i32) {
    %c0_i32 = arith.constant 0 : i32
    %c0_i32_0 = arith.constant 0 : i32
    return %arg0, %c0_i32, %arg1 : i32, i32, i32
  }
  func.func @transform_1(%arg0: i32, %arg1: i32) -> i32 {
    %c0_i32 = arith.constant 0 : i32
    %c0_i32_0 = arith.constant 0 : i32
    return %c0_i32 : i32
  }
  func.func @transform_2(%arg0: i32, %arg1: i32) -> i32 {
    %c0_i32 = arith.constant 0 : i32
    %c0_i32_0 = arith.constant 0 : i32
    return %c0_i32 : i32
  }
  func.func @transform_3(%arg0: i32, %arg1: i32) -> (i32, i32, i32) {
    %c0_i32 = arith.constant 0 : i32
    %c0_i32_0 = arith.constant 0 : i32
    return %arg0, %c0_i32, %arg1 : i32, i32, i32
  }
}

</mosaic_0001>

<llo_original>
// kernel: tpu_custom_call.1
$region0: #{tpu_custom_call.1}
  #allocation0 [shape = 'u32[]', space=smem, size = 0x4, offset = 0x4, fixed_abs, tag = 'smem constant byte address 0x4 - core index']
  #allocation1 [shape = 'u32[144,128]{1,0:T(1,128)}', space=vmem, size = 0x12000, scoped, tag = 'internal scratch']
  %s0 = inlined_call_operand.hbm [shape: f32[2,4,256], index: 0, kind: input, shape index: {}]
  %s1 = inlined_call_operand.vmem [shape: f32[12], index: 1, kind: input, shape index: {}]
  %s2 = inlined_call_operand.vmem [shape: f32[3], index: 2, kind: input, shape index: {}]
  %s3 = inlined_call_operand.vmem [shape: f32[2,3,256], index: 3, kind: output, shape index: {}]
  %s4 = sld [smem:[#allocation0]]
  $region57: #{tpu_custom_call.1} parent=0
    _
  %s6 = ssub.s32 1, %s4
  %s7 = scalar_select 0, %s6, %s4
  $region1: #{tpu_custom_call.1} parent=0
    #allocation2 [shape = 'u8[8192]{0}', space=vmem, size = 0x2000, scoped, tag = 'input window, operand 0']
    #allocation3 [shape = 's32[2]{0}', space=sflag, size = 0x8, scoped, tag = 'scoped memory for tpu_custom_call.1']
    #allocation4 [shape = 's32[2]{0}', space=sflag, size = 0x8, scoped, tag = 'scoped memory for tpu_custom_call.1']
    #allocation5 [shape = 'u8[512]{0}', space=smem, size = 0x200, scoped, tag = 'input window, operand 1, single buffered']
    #allocation6 [shape = 'u8[512]{0}', space=smem, size = 0x200, scoped, tag = 'input window, operand 2, single buffered']
    #allocation7 [shape = 's32[1]{0}', space=sflag, size = 0x4, scoped, tag = 'scoped memory for tpu_custom_call.1']
    %8 = vsyncpa [#allocation3], 0
    %s9 = scalar_lea.sflag [#allocation3], 1
    %10 = vsyncpa %s9, 0
    %11 = vsyncpa [#allocation4], 0
    %12 = vsyncpa [#allocation7], 0
    loop: start=0, step=1, limit=4
    $region2: #{tpu_custom_call.1} parent=1 // loop_pre_header
      _
    $region3: #{tpu_custom_call.1} parent=1 // loop_header
      %s14 = sphi 0, %s18
      %p15 = scmp.ge.s32.totalorder %s14, 4
      %s21 = sphi 0, %s33
      %s22 = sphi 0, %s29
      %s23 = sphi 0, %s21
      %s24 = sphi 0, %s22
      %s25 = sphi 0, %s23
      %s26 = sphi 0, %s24
      %s38 = sphi 0, %s40
      %s41 = sphi 0, %s38
      %s42 = sphi 0, %s41
      %s58 = sphi 0, %s42
      %s62 = sphi 0, %s62
      %s64 = sphi 0, %s62
      %s65 = sphi 0, %s64
      %s79 = sphi 0, %s65
      %s83 = sphi 0, %s83
      %s85 = sphi 0, %s83
      %s86 = sphi 0, %s85
      %s100 = sphi 0, %s86
      %s108 = sphi 0, %s110
      %s111 = sphi 0, %s108
      %s112 = sphi 0, %s111
      %s128 = sphi 0, %s112
    $region4: #{tpu_custom_call.1} parent=1 // loop_header_branch
      %17 = sbr.rel (%p15) target = $region8
    $region5: #{tpu_custom_call.1} parent=1 // loop_body
      %s19 = ssub.s32 %s14, 1
      %s20 = ssub.s32 %s14, 2
      %s27 = sadd.s32 1, %s22
      %p28 = scmp.ge.s32.totalorder %s27, 1
      %s29 = scalar_select %p28, 0, %s27
      %s30 = sadd.s32 1, %s21
      %s31 = scalar_select %p28, %s30, %s21
      %p32 = scmp.ge.s32.totalorder %s31, 2
      %s33 = scalar_select %p32, 0, %s31
      %s34 = ssub.s32 %s21, %s33
      %s35 = ssub.s32 %s22, %s29
      %s36 = sor.u32 %s34, %s35
      %p37 = scmp.eq.s32.totalorder %s36, 0
      %s39 = sadd.s32 %s38, 1
      %s40 = scalar_select %p37, %s38, %s39
      %p43 = pneg %p37
      %p44 = scmp.eq.s32.totalorder %s14, 1
      %p45 = por %p43, %p44
      %p46 = scmp.ne.s32.totalorder %s38, %s41
      %p47 = scmp.eq.s32.totalorder %s14, 0
      %p48 = por %p46, %p47
      %p49 = scmp.ne.s32.totalorder %s38, %s41
      %p50 = scmp.eq.s32.totalorder %s19, 1
      %p51 = por %p49, %p50
      %p52 = scmp.ne.s32.totalorder %s41, %s42
      %p53 = scmp.eq.s32.totalorder %s19, 0
      %p54 = por %p52, %p53
      %p55 = scmp.ne.s32.totalorder %s41, %s42
      %p56 = scmp.eq.s32.totalorder %s20, 1
      %p57 = por %p55, %p56
      %p59 = scmp.ne.s32.totalorder %s42, %s58
      %p60 = scmp.eq.s32.totalorder %s20, 0
      %p61 = por %p59, %p60
      %s63 = sadd.s32 %s62, 1
      %p66 = scmp.eq.s32.totalorder %s14, 1
      %p67 = scmp.ne.s32.totalorder %s62, %s64
      %p68 = scmp.eq.s32.totalorder %s14, 0
      %p69 = por %p67, %p68
      %p70 = scmp.ne.s32.totalorder %s62, %s64
      %p71 = scmp.eq.s32.totalorder %s19, 1
      %p72 = por %p70, %p71
      %p73 = scmp.ne.s32.totalorder %s64, %s65
      %p74 = scmp.eq.s32.totalorder %s19, 0
      %p75 = por %p73, %p74
      %p76 = scmp.ne.s32.totalorder %s64, %s65
      %p77 = scmp.eq.s32.totalorder %s20, 1
      %p78 = por %p76, %p77
      %p80 = scmp.ne.s32.totalorder %s65, %s79
      %p81 = scmp.eq.s32.totalorder %s20, 0
      %p82 = por %p80, %p81
      %s84 = sadd.s32 %s83, 1
      %p87 = scmp.eq.s32.totalorder %s14, 1
      %p88 = scmp.ne.s32.totalorder %s83, %s85
      %p89 = scmp.eq.s32.totalorder %s14, 0
      %p90 = por %p88, %p89
      %p91 = scmp.ne.s32.totalorder %s83, %s85
      %p92 = scmp.eq.s32.totalorder %s19, 1
      %p93 = por %p91, %p92
      %p94 = scmp.ne.s32.totalorder %s85, %s86
      %p95 = scmp.eq.s32.totalorder %s19, 0
      %p96 = por %p94, %p95
      %p97 = scmp.ne.s32.totalorder %s85, %s86
      %p98 = scmp.eq.s32.totalorder %s20, 1
      %p99 = por %p97, %p98
      %p101 = scmp.ne.s32.totalorder %s86, %s100
      %p102 = scmp.eq.s32.totalorder %s20, 0
      %p103 = por %p101, %p102
      %s104 = ssub.s32 %s21, %s33
      %s105 = ssub.s32 %s22, %s29
      %s106 = sor.u32 %s104, %s105
      %p107 = scmp.eq.s32.totalorder %s106, 0
      %s109 = sadd.s32 %s108, 1
      %s110 = scalar_select %p107, %s108, %s109
      %p113 = pneg %p107
      %p114 = scmp.eq.s32.totalorder %s14, 1
      %p115 = por %p113, %p114
      %p116 = scmp.ne.s32.totalorder %s108, %s111
      %p117 = scmp.eq.s32.totalorder %s14, 0
      %p118 = por %p116, %p117
      %p119 = scmp.ne.s32.totalorder %s108, %s111
      %p120 = scmp.eq.s32.totalorder %s19, 1
      %p121 = por %p119, %p120
      %p122 = scmp.ne.s32.totalorder %s111, %s112
      %p123 = scmp.eq.s32.totalorder %s19, 0
      %p124 = por %p122, %p123
      %p125 = scmp.ne.s32.totalorder %s111, %s112
      %p126 = scmp.eq.s32.totalorder %s20, 1
      %p127 = por %p125, %p126
      %p129 = scmp.ne.s32.totalorder %s112, %s128
      %p130 = scmp.eq.s32.totalorder %s20, 0
      %p131 = por %p129, %p130
      %p132 = scmp.le.s32.totalorder 1, %s14
      %p133 = scmp.lt.s32.totalorder %s14, 3
      %p134 = pnand %p132, %p133
      %p135 = pneg %p134
      // Predicated region
      $region9: #{tpu_custom_call.1} parent=5 // pred_check
        _
      $region10: #{tpu_custom_call.1} parent=5 // pred_check_branch
        %137 = sbr.rel (%p134) target = $region12
      $region11: #{tpu_custom_call.1} parent=5 // pred_region
        %s138 = ssub.s32 %s14, 1
        // Predicated region
        $region13: #{tpu_custom_call.1} parent=11 // pred_check
          %p139 = pneg %p75
        $region14: #{tpu_custom_call.1} parent=11 // pred_check_branch
          %141 = sbr.rel (%p139) target = $region16
        $region15: #{tpu_custom_call.1} parent=11 // pred_region
          %s143 = ssub.s32 16, 16
          %144 = vsyncadd [#allocation4], %s143
          %s146 = sshll.u32 %s1, 4
          %s147 = int_to_ptr.vmem [resolvable:$true] %s146
          %149 = dma.vmem_to_smem %s147, 16, [#allocation5], [#allocation4]
        $region16: #{tpu_custom_call.1} parent=11 // pred_fallthru
          _
        // Predicated region
        $region17: #{tpu_custom_call.1} parent=11 // pred_check
          %p150 = pneg %p96
        $region18: #{tpu_custom_call.1} parent=11 // pred_check_branch
          %152 = sbr.rel (%p150) target = $region20
        $region19: #{tpu_custom_call.1} parent=11 // pred_region
          %s154 = ssub.s32 16, 16
          %155 = vsyncadd [#allocation7], %s154
          %s157 = sshll.u32 %s2, 4
          %s158 = int_to_ptr.vmem [resolvable:$true] %s157
          %160 = dma.vmem_to_smem %s158, 16, [#allocation6], [#allocation7]
        $region20: #{tpu_custom_call.1} parent=11 // pred_fallthru
          _
      $region12: #{tpu_custom_call.1} parent=5 // pred_fallthru
        _
      %p161 = scmp.lt.s32.totalorder %s14, 2
      // Predicated region
      $region21: #{tpu_custom_call.1} parent=5 // pred_check
        %p162 = pneg %p161
      $region22: #{tpu_custom_call.1} parent=5 // pred_check_branch
        %164 = sbr.rel (%p162) target = $region24
      $region23: #{tpu_custom_call.1} parent=5 // pred_region
        // Predicated region
        $region25: #{tpu_custom_call.1} parent=23 // pred_check
          %p165 = pneg %p48
        $region26: #{tpu_custom_call.1} parent=23 // pred_check_branch
          %167 = sbr.rel (%p165) target = $region28
        $region27: #{tpu_custom_call.1} parent=23 // pred_region
          %s168 = sand.u32 %s38, 1
          %s169 = scalar_lea.sflag [#allocation3], %s168
          %s170 = sand.u32 %s38, 1
          %s171 = smul.addr %s170, 8
          %s172 = scalar_lea.vmem [#allocation2], %s171
          %s173 = smul.u32 2, %s22
          %s175 = ssub.s32 128, 128
          %176 = vsyncadd %s169, %s175
          %s177 = smul.addr %s21, 2
          %s178 = sadd.s32 %s173, %s177
          %s179 = smul.addr %s178, 64
          %s180 = scalar_lea.hbm %s0, %s179
          %s182 = sshll.u32 %s172, 4
          %s183 = int_to_ptr.vmem [resolvable:$true] %s182
          %185 = dma.hbm_to_vmem [thread:$0]  %s180, 128, %s183, %s169
        $region28: #{tpu_custom_call.1} parent=23 // pred_fallthru
          _
      $region24: #{tpu_custom_call.1} parent=5 // pred_fallthru
        _
      %p186 = scmp.le.s32.totalorder 1, %s14
      %p187 = scmp.lt.s32.totalorder %s14, 3
      %p188 = pnand %p186, %p187
      %p189 = pneg %p188
      // Predicated region
      $region29: #{tpu_custom_call.1} parent=5 // pred_check
        _
      $region30: #{tpu_custom_call.1} parent=5 // pred_check_branch
        %191 = sbr.rel (%p188) target = $region32
      $region31: #{tpu_custom_call.1} parent=5 // pred_region
        %s192 = ssub.s32 %s14, 1
        %s193 = sand.u32 %s41, 1
        %s194 = scalar_lea.sflag [#allocation3], %s193
        %s195 = sand.u32 %s41, 1
        %s196 = smul.addr %s195, 8
        %s197 = scalar_lea.vmem [#allocation2], %s196
        // Predicated region
        $region33: #{tpu_custom_call.1} parent=31 // pred_check
          %p198 = pneg %p54
        $region34: #{tpu_custom_call.1} parent=31 // pred_check_branch
          %200 = sbr.rel (%p198) target = $region36
        $region35: #{tpu_custom_call.1} parent=31 // pred_region
          %201 = dma.done %s194, 128
        $region36: #{tpu_custom_call.1} parent=31 // pred_fallthru
          _
        // Predicated region
        $region37: #{tpu_custom_call.1} parent=31 // pred_check
          %p202 = pneg %p75
        $region38: #{tpu_custom_call.1} parent=31 // pred_check_branch
          %204 = sbr.rel (%p202) target = $region40
        $region39: #{tpu_custom_call.1} parent=31 // pred_region
          %205 = dma.done [#allocation4], 16
        $region40: #{tpu_custom_call.1} parent=31 // pred_fallthru
          _
        // Predicated region
        $region41: #{tpu_custom_call.1} parent=31 // pred_check
          %p206 = pneg %p96
        $region42: #{tpu_custom_call.1} parent=31 // pred_check_branch
          %208 = sbr.rel (%p206) target = $region44
        $region43: #{tpu_custom_call.1} parent=31 // pred_region
          %209 = dma.done [#allocation7], 16
        $region44: #{tpu_custom_call.1} parent=31 // pred_fallthru
          _
        %210 = sfence
        %s211 = sand.u32 %s41, 1
        %s212 = scalar_lea.sflag [#allocation3], %s211
        %s213 = sand.u32 %s41, 1
        %s214 = smul.addr %s213, 8
        %s215 = scalar_lea.vmem [#allocation2], %s214
        %p216 = pneg %p54
        %p217 = pneg %p51
        %p218 = pneg %p75
        %p219 = pneg %p72
        %p220 = pneg %p96
        %p221 = pneg %p93
        %p222 = pneg %p124
        %p223 = pneg %p121
        %s224 = smul.u32 2, %s24
        %p225 = scmp.lt.s32.totalorder %s23, 1
        %s226 = scalar_select %p225, %s23, 1
        %p227 = scmp.lt.s32.totalorder %s224, 1
        %s228 = scalar_select %p227, %s224, 1
        %s229 = smul.addr %s226, 2
        %s230 = sadd.s32 %s228, %s229
        %s231 = smul.addr %s230, 4
        %s232 = scalar_lea.vmem %s3, %s231
        %s233 = smul.u32 2, %s24
        %s234 = smul.u32 2, %s24
        %p235 = scmp.lt.s32.totalorder %s23, 1
        %s236 = scalar_select %p235, %s23, 1
        %p237 = scmp.lt.s32.totalorder %s234, 1
        %s238 = scalar_select %p237, %s234, 1
        %s239 = smul.addr %s236, 2
        %s240 = sadd.s32 %s238, %s239
        %s241 = smul.addr %s240, 4
        %s242 = scalar_lea.vmem %s3, %s241
        %s243 = smul.u32 2, %s24
        %v244 = vld [vmem:[%s197] sm:$0xff]
        %s245 = sld [smem:[#allocation5]]
        %v246 = vstv %s245
        %v247 = vmul.f32 %v244, %v246
        %s248 = sld [smem:[#allocation5 + $0x1]]
        %v249 = vstv %s248
        %v250 = vmul.f32 %v244, %v249
        %v252 = vrot.slane %v250, 5
        %v253 = vrot.slane %v252, 4
        %v255 = vadd.f32 %v247, %v253
        %s256 = sld [smem:[#allocation5 + $0x2]]
        %v257 = vstv %s256
        %v258 = vmul.f32 %v244, %v257
        %v260 = vrot.slane %v258, 6
        %v261 = vrot.slane %v260, 4
        %v263 = vadd.f32 %v255, %v261
        %s264 = sld [smem:[#allocation5 + $0x3]]
        %v265 = vstv %s264
        %v266 = vmul.f32 %v244, %v265
        %v268 = vrot.slane %v266, 7
        %v269 = vrot.slane %v268, 4
        %v271 = vadd.f32 %v263, %v269
        %s272 = sld [smem:[#allocation6]]
        %v273 = vstv %s272
        %v274 = vadd.f32 %v271, %v273
        %s275 = sld [smem:[#allocation5 + $0x4]]
        %v276 = vstv %s275
        %v277 = vmul.f32 %v244, %v276
        %s278 = sld [smem:[#allocation5 + $0x5]]
        %v279 = vstv %s278
        %v280 = vmul.f32 %v244, %v279
        %v282 = vrot.slane %v280, 5
        %v283 = vrot.slane %v282, 4
        %v285 = vadd.f32 %v277, %v283
        %s286 = sld [smem:[#allocation5 + $0x6]]
        %v287 = vstv %s286
        %v288 = vmul.f32 %v244, %v287
        %v290 = vrot.slane %v288, 6
        %v291 = vrot.slane %v290, 4
        %v293 = vadd.f32 %v285, %v291
        %s294 = sld [smem:[#allocation5 + $0x7]]
        %v295 = vstv %s294
        %v296 = vmul.f32 %v244, %v295
        %v298 = vrot.slane %v296, 7
        %v299 = vrot.slane %v298, 4
        %v301 = vadd.f32 %v293, %v299
        %s302 = sld [smem:[#allocation6 + $0x1]]
        %v303 = vstv %s302
        %v304 = vadd.f32 %v301, %v303
        %s305 = sld [smem:[#allocation5 + $0x8]]
        %v306 = vstv %s305
        %v307 = vmul.f32 %v244, %v306
        %s308 = sld [smem:[#allocation5 + $0x9]]
        %v309 = vstv %s308
        %v310 = vmul.f32 %v244, %v309
        %v312 = vrot.slane %v310, 5
        %v313 = vrot.slane %v312, 4
        %v315 = vadd.f32 %v307, %v313
        %s316 = sld [smem:[#allocation5 + $0xa]]
        %v317 = vstv %s316
        %v318 = vmul.f32 %v244, %v317
        %v320 = vrot.slane %v318, 6
        %v321 = vrot.slane %v320, 4
        %v323 = vadd.f32 %v315, %v321
        %s324 = sld [smem:[#allocation5 + $0xb]]
        %v325 = vstv %s324
        %v326 = vmul.f32 %v244, %v325
        %v328 = vrot.slane %v326, 7
        %v329 = vrot.slane %v328, 4
        %v331 = vadd.f32 %v323, %v329
        %s332 = sld [smem:[#allocation6 + $0x2]]
        %v333 = vstv %s332
        %v334 = vadd.f32 %v331, %v333
        %v336 = vlaneseq
        %v337 = vshrl.u32 %v336, 7
        %v338 = vsub.s32 0, %v337
        %v339 = vrot.slane %v274, %v338
        %v340 = vlaneseq
        %v341 = vshrl.u32 %v340, 7
        %v342 = vsub.s32 4, %v341
        %v343 = vrot.slane %v274, %v342
        %v347 = vlaneseq
        %v348 = vshrl.u32 %v347, 7
        %v349 = vsub.s32 0, %v348
        %v350 = vrot.slane %v304, %v349
        %v351 = vlaneseq
        %v352 = vshrl.u32 %v351, 7
        %v353 = vsub.s32 4, %v352
        %v354 = vrot.slane %v304, %v353
        %v358 = vlaneseq
        %v359 = vshrl.u32 %v358, 7
        %v360 = vsub.s32 0, %v359
        %v361 = vrot.slane %v334, %v360
        %v362 = vlaneseq
        %v363 = vshrl.u32 %v362, 7
        %v364 = vsub.s32 4, %v363
        %v365 = vrot.slane %v334, %v364
        %vm368 = vcmask 1040384
        %v369 = vsel %vm368, %v339, %v350
        %v370 = vsel %vm368, %v343, %v354
        %vm371 = vcmask 1041408
        %v372 = vsel %vm371, %v369, %v361
        %v373 = vsel %vm371, %v370, %v365
        %v376 = vcombine.low %v372, %v373
        %378 = vst [vmem:[%s242] sm:$0x77] %v376
        %s379 = smul.u32 2, %s24
        %p380 = scmp.lt.s32.totalorder %s23, 1
        %s381 = scalar_select %p380, %s23, 1
        %p382 = scmp.lt.s32.totalorder %s379, 1
        %s383 = scalar_select %p382, %s379, 1
        %s384 = smul.addr %s381, 2
        %s385 = sadd.s32 %s383, %s384
        %s386 = smul.addr %s385, 4
        %s387 = scalar_lea.vmem %s3, %s386
        // Predicated region
        $region45: #{tpu_custom_call.1} parent=31 // pred_check
          %p388 = pneg %p121
        $region46: #{tpu_custom_call.1} parent=31 // pred_check_branch
          %390 = sbr.rel (%p388) target = $region48
        $region47: #{tpu_custom_call.1} parent=31 // pred_region
          %s391 = smul.u32 2, %s24
        $region48: #{tpu_custom_call.1} parent=31 // pred_fallthru
          _
      $region32: #{tpu_custom_call.1} parent=5 // pred_fallthru
        _
      %p392 = scmp.le.s32.totalorder 2, %s14
      // Predicated region
      $region49: #{tpu_custom_call.1} parent=5 // pred_check
        %p393 = pneg %p392
      $region50: #{tpu_custom_call.1} parent=5 // pred_check_branch
        %395 = sbr.rel (%p393) target = $region52
      $region51: #{tpu_custom_call.1} parent=5 // pred_region
        %s396 = ssub.s32 %s14, 2
        // Predicated region
        $region53: #{tpu_custom_call.1} parent=51 // pred_check
          %p397 = pneg %p127
        $region54: #{tpu_custom_call.1} parent=51 // pred_check_branch
          %399 = sbr.rel (%p397) target = $region56
        $region55: #{tpu_custom_call.1} parent=51 // pred_region
          %s400 = smul.u32 2, %s26
          %p401 = scmp.lt.s32.totalorder %s25, 1
          %s402 = scalar_select %p401, %s25, 1
          %p403 = scmp.lt.s32.totalorder %s400, 1
          %s404 = scalar_select %p403, %s400, 1
          %s405 = smul.addr %s402, 2
          %s406 = sadd.s32 %s404, %s405
          %s407 = smul.addr %s406, 4
          %s408 = scalar_lea.vmem %s3, %s407
        $region56: #{tpu_custom_call.1} parent=51 // pred_fallthru
          _
      $region52: #{tpu_custom_call.1} parent=5 // pred_fallthru
        _
    $region6: #{tpu_custom_call.1} parent=1 // loop_footer
      %s18 = sadd.s32 1, %s14
    $region7: #{tpu_custom_call.1} parent=1 // loop_footer_branch
      %13 = sbr.rel target = $region3
    $region8: #{tpu_custom_call.1} parent=1 // loop_exit
      _
    %409 = vsyncpa [#allocation3], 1
    %s410 = scalar_lea.sflag [#allocation3], 1
    %411 = vsyncpa %s410, 1
    %412 = vsyncpa [#allocation4], 1
    %s413 = scalar_lea.sflag [#allocation4], 1
    %414 = vsyncpa %s413, 1
    %415 = vsyncpa [#allocation7], 1

</llo_original>
